<compile_context>
chip_gen: v5e
topology: v5e:2x2
jax: 0.10.0
libtpu: 0.0.40
codegen_flags: <defaults>
</compile_context>

<pallas_src>
import functools

import jax
import jax.numpy as jnp
import numpy as np
from jax.experimental import pallas as pl
from jax.experimental.pallas import tpu as pltpu

LANE = 128
_TARGET_BLOCK_BYTES = 2 << 20      # ~2 MiB blocks: ~85% of HBM roofline per measurements
_FUSED_MAX_SLAB_BYTES = 4 << 20    # above this per-batch slab size, use the two-pass path
_VMEM_CAP_BYTES = 48 << 20         # stay safely under v7x's 64 MiB physical VMEM


# ----------------------------- in-kernel helpers ------------------------------------


def _cse_gate(pooled, w1_ref, b1_ref, w2_ref, b2_ref):
    """pooled: (B, C) f32 -> per-channel sigmoid gate (B, C) f32 (two tiny MXU dots)."""
    z = jnp.dot(pooled, w1_ref[...], preferred_element_type=jnp.float32) + b1_ref[...]
    z = jnp.maximum(z, 0.0)
    return jax.nn.sigmoid(
        jnp.dot(z, w2_ref[...], preferred_element_type=jnp.float32) + b2_ref[...]
    )


def _sse_gate(x, ws_ref, bs_ref):
    """x: (B, C, P) f32, ws_ref: (C, 1) f32, bs_ref: SMEM (1,) -> per-pixel gate (B, P)."""
    s = jnp.sum(x * ws_ref[...][None, :, :], axis=1)                       # (B, P)
    return jax.nn.sigmoid(s + bs_ref[0])


# ---------------------------------- kernels ------------------------------------------


def _scse_fused_kernel(x_ref, w1_ref, b1_ref, w2_ref, b2_ref, ws_ref, bs_ref, o_ref,
                       *, inv_hw):
    # x_ref: (NB, C, HWp) -- spatial zero-padded to HWp, so the sum-pool stays exact.
    x = x_ref[...].astype(jnp.float32)
    pooled = jnp.sum(x, axis=2) * inv_hw                                   # (NB, C)
    c_gate = _cse_gate(pooled, w1_ref, b1_ref, w2_ref, b2_ref)             # (NB, C)
    s_gate = _sse_gate(x, ws_ref, bs_ref)                                  # (NB, HWp)
    o_ref[...] = (x * (c_gate[:, :, None] + s_gate[:, None, :])).astype(o_ref.dtype)


def _scse_gate_kernel(x_ref, w1_ref, b1_ref, w2_ref, b2_ref, cg_ref, acc_ref, *, inv_hw):
    # Two-pass path, pass 1: accumulate the spatial sum across HW tiles, then run the
    # (tiny) cSE MLP on the last tile and emit the per-channel gate.
    k = pl.program_id(1)

    @pl.when(k == 0)
    def _():
        acc_ref[...] = jnp.zeros_like(acc_ref)

    x = x_ref[...].astype(jnp.float32)                                     # (1, C, THW)
    acc_ref[...] += jnp.sum(x, axis=2)                                     # (1, C)

    @pl.when(k == pl.num_programs(1) - 1)
    def _():
        c_gate = _cse_gate(acc_ref[...] * inv_hw, w1_ref, b1_ref, w2_ref, b2_ref)
        cg_ref[...] = c_gate[:, None, :]                                   # (1, 1, C)


def _scse_apply_kernel(x_ref, cg_ref, ws_ref, bs_ref, o_ref):
    # Two-pass path, pass 2: per-HW-tile sSE gate + apply both gates.
    x = x_ref[...].astype(jnp.float32)                                     # (1, C, THW)
    c_gate = cg_ref[...][:, 0, :]                                          # (1, C)
    s_gate = _sse_gate(x, ws_ref, bs_ref)                                  # (1, THW)
    o_ref[...] = (x * (c_gate[:, :, None] + s_gate[:, None, :])).astype(o_ref.dtype)


# --------------------------------- wrapper --------------------------------------------


def scse_forward(x, w1, b1, w2, b2, ws, bs, *, force_two_pass=False, hw_tile=None):
    """SCSE forward pass.

    x: (N, C, H, W), f32 or bf16 (bf16 halves HBM I/O; gate math is always f32).
    Params use PyTorch 1x1-conv layouts: w1 (mid, C), b1 (mid,), w2 (C, mid),
    b2 (C,), ws (1, C), bs (1,).
    """
    N, C, H, W = x.shape
    HW = H * W
    mid = w1.shape[0]
    itemsize = jnp.dtype(x.dtype).itemsize
    inv_hw = 1.0 / float(HW)

    # Lane-major f32 parameter tiles; sSE weight as a column (free lane-broadcast);
    # the scalar sSE bias rides in SMEM.
    w1_t = jnp.asarray(w1, jnp.float32).T                                  # (C, mid)
    b1_2 = jnp.asarray(b1, jnp.float32).reshape(1, mid)
    w2_t = jnp.asarray(w2, jnp.float32).T                                  # (mid, C)
    b2_2 = jnp.asarray(b2, jnp.float32).reshape(1, C)
    ws_c = jnp.asarray(ws, jnp.float32).reshape(C, 1)                      # (C, 1)
    bs_1 = jnp.asarray(bs, jnp.float32).reshape(1)

    param_bytes = 4 * (2 * C * mid + mid + 2 * C + 1)

    hw128 = pl.cdiv(HW, LANE) * LANE
    slab = C * hw128 * itemsize                                            # one padded batch slab
    use_fused = (not force_two_pass) and slab <= _FUSED_MAX_SLAB_BYTES

    x2 = x.reshape(N, C, HW)

    if use_fused:
        # ---------------- fused single-pass path (read x once, write once) -----------
        hwp = hw128
        nb = max(1, min(N, _TARGET_BLOCK_BYTES // max(slab, 1)))
        n_pad = pl.cdiv(N, nb) * nb
        if n_pad != N or hwp != HW:
            x2 = jnp.pad(x2, ((0, n_pad - N), (0, 0), (0, hwp - HW)))

        block_bytes = nb * C * hwp * itemsize
        f32_block = nb * C * hwp * 4
        vmem_limit = int(min(_VMEM_CAP_BYTES,
                             max(16 << 20,
                                 4 * block_bytes + 3 * f32_block
                                 + 2 * param_bytes + (2 << 20))))

        out = pl.pallas_call(
            functools.partial(_scse_fused_kernel, inv_hw=inv_hw),
            out_shape=jax.ShapeDtypeStruct((n_pad, C, hwp), x.dtype),
            grid_spec=pltpu.PrefetchScalarGridSpec(
                num_scalar_prefetch=0,
                grid=(n_pad // nb,),
                in_specs=[
                    pl.BlockSpec((nb, C, hwp), lambda n: (n, 0, 0)),       # x
                    pl.BlockSpec((C, mid), lambda n: (0, 0)),              # w1^T
                    pl.BlockSpec((1, mid), lambda n: (0, 0)),              # b1
                    pl.BlockSpec((mid, C), lambda n: (0, 0)),              # w2^T
                    pl.BlockSpec((1, C), lambda n: (0, 0)),                # b2
                    pl.BlockSpec((C, 1), lambda n: (0, 0)),                # ws column
                    pl.BlockSpec(memory_space=pltpu.MemorySpace.SMEM),     # bs (scalar)
                ],
                out_specs=pl.BlockSpec((nb, C, hwp), lambda n: (n, 0, 0)),
            ),
            compiler_params=pltpu.CompilerParams(
                dimension_semantics=("parallel",),
                vmem_limit_bytes=vmem_limit,
            ),
        )(x2, w1_t, b1_2, w2_t, b2_2, ws_c, bs_1)
        if n_pad != N or hwp != HW:
            out = out[:N, :, :HW]
        return out.reshape(N, C, H, W)

    # -------------------- two-pass path: HW-tiled gate + apply --------------------------
    if hw_tile is None:
        thw = min(hw128,
                  max(LANE, (_TARGET_BLOCK_BYTES // max(C * itemsize, 1)) // LANE * LANE))
    else:
        assert hw_tile % LANE == 0, "hw_tile must be a multiple of 128"
        thw = min(hw_tile, hw128)
    hwp = pl.cdiv(HW, thw) * thw
    n_hw = hwp // thw

    if hwp != HW:
        x2 = jnp.pad(x2, ((0, 0), (0, 0), (0, hwp - HW)))

    tile_bytes = C * thw * itemsize
    f32_tile = C * thw * 4
    vmem1 = int(min(_VMEM_CAP_BYTES,
                    max(16 << 20,
                        2 * tile_bytes + 2 * f32_tile + 2 * param_bytes + (2 << 20))))
    vmem2 = int(min(_VMEM_CAP_BYTES,
                    max(16 << 20,
                        4 * tile_bytes + 3 * f32_tile + 2 * param_bytes + (2 << 20))))

    # Pass 1: per-(n) channel gate; HW tiles accumulate into a VMEM scratch.
    c_gate = pl.pallas_call(
        functools.partial(_scse_gate_kernel, inv_hw=inv_hw),
        out_shape=jax.ShapeDtypeStruct((N, 1, C), jnp.float32),
        grid_spec=pltpu.PrefetchScalarGridSpec(
            num_scalar_prefetch=0,
            grid=(N, n_hw),
            in_specs=[
                pl.BlockSpec((1, C, thw), lambda n, k: (n, 0, k)),         # x tile
                pl.BlockSpec((C, mid), lambda n, k: (0, 0)),               # w1^T
                pl.BlockSpec((1, mid), lambda n, k: (0, 0)),               # b1
                pl.BlockSpec((mid, C), lambda n, k: (0, 0)),               # w2^T
                pl.BlockSpec((1, C), lambda n, k: (0, 0)),                 # b2
            ],
            out_specs=pl.BlockSpec((1, 1, C), lambda n, k: (n, 0, 0)),
            scratch_shapes=[pltpu.VMEM((1, C), jnp.float32)],
        ),
        compiler_params=pltpu.CompilerParams(
            dimension_semantics=("parallel", "arbitrary"),
            vmem_limit_bytes=vmem1,
        ),
    )(x2, w1_t, b1_2, w2_t, b2_2)

    # Pass 2: apply both gates; fully parallel grid (megacore / v7x friendly).
    out = pl.pallas_call(
        _scse_apply_kernel,
        out_shape=jax.ShapeDtypeStruct((N, C, hwp), x.dtype),
        grid_spec=pltpu.PrefetchScalarGridSpec(
            num_scalar_prefetch=0,
            grid=(N, n_hw),
            in_specs=[
                pl.BlockSpec((1, C, thw), lambda n, k: (n, 0, k)),         # x tile
                pl.BlockSpec((1, 1, C), lambda n, k: (n, 0, 0)),           # c_gate
                pl.BlockSpec((C, 1), lambda n, k: (0, 0)),                 # ws column
                pl.BlockSpec(memory_space=pltpu.MemorySpace.SMEM),         # bs (scalar)
            ],
            out_specs=pl.BlockSpec((1, C, thw), lambda n, k: (n, 0, k)),
        ),
        compiler_params=pltpu.CompilerParams(
            dimension_semantics=("parallel", "parallel"),
            vmem_limit_bytes=vmem2,
        ),
    )(x2, c_gate, ws_c, bs_1)

    if hwp != HW:
        out = out[:, :, :HW]
    return out.reshape(N, C, H, W)


# --------------------------------- reference -------------------------------------------


def scse_reference(x, w1, b1, w2, b2, ws, bs):
    """Plain-JAX reference mirroring the PyTorch module (f32 math)."""
    xf = x.astype(jnp.float32)
    pooled = jnp.mean(xf, axis=(2, 3))                                     # (N, C)
    z = jnp.maximum(pooled @ w1.T + b1, 0.0)                               # (N, mid)
    c_gate = jax.nn.sigmoid(z @ w2.T + b2)                                 # (N, C)
    s_gate = jax.nn.sigmoid(
        jnp.einsum("nchw,oc->nohw", xf, ws) + bs.reshape(1, 1, 1, 1))      # (N,1,H,W)
    return xf * c_gate[:, :, None, None] + xf * s_gate


# ----------------------------------- main ------------------------------------------------


if __name__ == "__main__":
    key = jax.random.PRNGKey(0)

    def make_params(k, C, reduction):
        mid = max(1, C // reduction)
        k1, k2, k3, k4, k5, k6 = jax.random.split(k, 6)
        w1 = jax.random.normal(k1, (mid, C), jnp.float32) * 0.1   # Conv2d(C, C//r, 1)
        b1 = jax.random.normal(k2, (mid,), jnp.float32) * 0.1
        w2 = jax.random.normal(k3, (C, mid), jnp.float32) * 0.1   # Conv2d(C//r, C, 1)
        b2 = jax.random.normal(k4, (C,), jnp.float32) * 0.1
        ws = jax.random.normal(k5, (1, C), jnp.float32) * 0.1     # Conv2d(C, 1, 1)
        bs = jax.random.normal(k6, (1,), jnp.float32) * 0.1
        return w1, b1, w2, b2, ws, bs

    # --- Test 1: fused single-pass path, f32, lane-aligned HW (N batched per step) ---
    kx, kp, key = jax.random.split(key, 3)
    N, C, H, W = 2, 32, 16, 16
    x = jax.random.normal(kx, (N, C, H, W), jnp.float32)
    params = make_params(kp, C, 16)
    out = jax.block_until_ready(scse_forward(x, *params))
    ref = jax.block_until_ready(scse_reference(x, *params))
    np.testing.assert_allclose(np.asarray(out), np.asarray(ref), rtol=1e-5, atol=1e-5)

    # --- Test 2: two-pass HW-tiled path (forced), spatial not a multiple of 128 ------
    kx2, kp2, key = jax.random.split(key, 3)
    N2, C2, H2, W2 = 3, 32, 20, 20          # HW=400 -> padded to 512 -> 4 tiles of 128
    x_b = jax.random.normal(kx2, (N2, C2, H2, W2), jnp.float32)
    params2 = make_params(kp2, C2, 16)
    out2 = jax.block_until_ready(
        scse_forward(x_b, *params2, force_two_pass=True, hw_tile=128))
    ref2 = jax.block_until_ready(scse_reference(x_b, *params2))
    np.testing.assert_allclose(np.asarray(out2), np.asarray(ref2), rtol=1e-5, atol=1e-5)

    # --- Test 3: bf16 activations / output (halved HBM I/O), gate math still f32 -----
    out3 = jax.block_until_ready(scse_forward(x.astype(jnp.bfloat16), *params))
    np.testing.assert_allclose(np.asarray(out3.astype(jnp.float32)), np.asarray(ref),
                               rtol=5e-2, atol=5e-2)

    print("KERNEL_OK")
</pallas_src>

<mosaic_0001>
module attributes {stable_mosaic.version = 11 : i64} {
  func.func @_scse_fused_kernel(%arg0: i32, %arg1: memref<2x32x256xf32, #tpu.memory_space<vmem>>, %arg2: memref<32x2xf32, #tpu.memory_space<vmem>>, %arg3: memref<1x2xf32, #tpu.memory_space<vmem>>, %arg4: memref<2x32xf32, #tpu.memory_space<vmem>>, %arg5: memref<1x32xf32, #tpu.memory_space<vmem>>, %arg6: memref<32x1xf32, #tpu.memory_space<vmem>>, %arg7: memref<1xf32, #tpu.memory_space<smem>>, %arg8: memref<2x32x256xf32, #tpu.memory_space<vmem>>) attributes {dimension_semantics = [#tpu.dimension_semantics<parallel>], iteration_bounds = array<i64: 1>, scalar_prefetch = 0 : i64, scratch_operands = 0 : i64, tpu.core_type = #tpu.core_type<tc>, window_params = [{transform_indices = @transform_0, window_bounds = array<i64: 2, 32, 256>}, {pipeline_mode = #tpu.pipeline_mode<synchronous>, transform_indices = @transform_1, window_bounds = array<i64: 32, 2>}, {pipeline_mode = #tpu.pipeline_mode<synchronous>, transform_indices = @transform_2, window_bounds = array<i64: 1, 2>}, {pipeline_mode = #tpu.pipeline_mode<synchronous>, transform_indices = @transform_3, window_bounds = array<i64: 2, 32>}, {pipeline_mode = #tpu.pipeline_mode<synchronous>, transform_indices = @transform_4, window_bounds = array<i64: 1, 32>}, {pipeline_mode = #tpu.pipeline_mode<synchronous>, transform_indices = @transform_5, window_bounds = array<i64: 32, 1>}, {transform_indices = @transform_6, window_bounds = array<i64: 1>}, {transform_indices = @transform_7, window_bounds = array<i64: 2, 32, 256>}]} {
    %c0 = arith.constant 0 : index
    %c0_0 = arith.constant 0 : index
    %c0_1 = arith.constant 0 : index
    %0 = vector.load %arg1[%c0, %c0_0, %c0_1] : memref<2x32x256xf32, #tpu.memory_space<vmem>>, vector<2x32x256xf32>
    %cst = arith.constant dense<0.000000e+00> : vector<2x32xf32>
    %1 = vector.multi_reduction <add>, %0, %cst [2] : vector<2x32x256xf32> to vector<2x32xf32>
    %cst_2 = arith.constant 3.906250e-03 : f32
    %2 = vector.broadcast %cst_2 : f32 to vector<2x32xf32>
    %3 = arith.mulf %1, %2 : vector<2x32xf32>
    %c0_3 = arith.constant 0 : index
    %c0_4 = arith.constant 0 : index
    %4 = vector.load %arg2[%c0_3, %c0_4] : memref<32x2xf32, #tpu.memory_space<vmem>>, vector<32x2xf32>
    %cst_5 = arith.constant dense<0.000000e+00> : vector<2x2xf32>
    %5 = tpu.matmul %3, %4, %cst_5 {dimension_numbers = #tpu.dot_dimension_numbers<[1], [0], [0], [1], [0, 0, 1, 1], [], []>} : vector<2x32xf32>, vector<32x2xf32>, vector<2x2xf32> -> vector<2x2xf32>
    %c0_6 = arith.constant 0 : index
    %c0_7 = arith.constant 0 : index
    %6 = vector.load %arg3[%c0_6, %c0_7] : memref<1x2xf32, #tpu.memory_space<vmem>>, vector<1x2xf32>
    %7 = vector.broadcast %6 : vector<1x2xf32> to vector<2x2xf32>
    %8 = arith.addf %5, %7 : vector<2x2xf32>
    %cst_8 = arith.constant 0.000000e+00 : f32
    %9 = vector.broadcast %cst_8 : f32 to vector<2x2xf32>
    %10 = arith.maximumf %8, %9 : vector<2x2xf32>
    %c0_9 = arith.constant 0 : index
    %c0_10 = arith.constant 0 : index
    %11 = vector.load %arg4[%c0_9, %c0_10] : memref<2x32xf32, #tpu.memory_space<vmem>>, vector<2x32xf32>
    %cst_11 = arith.constant dense<0.000000e+00> : vector<2x32xf32>
    %12 = tpu.matmul %10, %11, %cst_11 {dimension_numbers = #tpu.dot_dimension_numbers<[1], [0], [0], [1], [0, 0, 1, 1], [], []>} : vector<2x2xf32>, vector<2x32xf32>, vector<2x32xf32> -> vector<2x32xf32>
    %c0_12 = arith.constant 0 : index
    %c0_13 = arith.constant 0 : index
    %13 = vector.load %arg5[%c0_12, %c0_13] : memref<1x32xf32, #tpu.memory_space<vmem>>, vector<1x32xf32>
    %14 = vector.broadcast %13 : vector<1x32xf32> to vector<2x32xf32>
    %15 = arith.addf %12, %14 : vector<2x32xf32>
    %16 = arith.negf %15 : vector<2x32xf32>
    %17 = math.exp %16 : vector<2x32xf32>
    %cst_14 = arith.constant 1.000000e+00 : f32
    %18 = vector.broadcast %cst_14 : f32 to vector<2x32xf32>
    %19 = arith.addf %18, %17 : vector<2x32xf32>
    %20 = arith.divf %18, %19 : vector<2x32xf32>
    %c0_15 = arith.constant 0 : index
    %c0_16 = arith.constant 0 : index
    %21 = vector.load %arg6[%c0_15, %c0_16] : memref<32x1xf32, #tpu.memory_space<vmem>>, vector<32x1xf32>
    %22 = vector.shape_cast %21 : vector<32x1xf32> to vector<1x32x1xf32>
    %23 = vector.broadcast %22 : vector<1x32x1xf32> to vector<2x32x256xf32>
    %24 = arith.mulf %0, %23 : vector<2x32x256xf32>
    %cst_17 = arith.constant dense<0.000000e+00> : vector<2x256xf32>
    %25 = vector.multi_reduction <add>, %24, %cst_17 [1] : vector<2x32x256xf32> to vector<2x256xf32>
    %c0_18 = arith.constant 0 : index
    %26 = memref.load %arg7[%c0_18] : memref<1xf32, #tpu.memory_space<smem>>
    %27 = vector.broadcast %26 : f32 to vector<2x256xf32>
    %28 = arith.addf %25, %27 : vector<2x256xf32>
    %29 = arith.negf %28 : vector<2x256xf32>
    %30 = math.exp %29 : vector<2x256xf32>
    %cst_19 = arith.constant 1.000000e+00 : f32
    %31 = vector.broadcast %cst_19 : f32 to vector<2x256xf32>
    %32 = arith.addf %31, %30 : vector<2x256xf32>
    %33 = arith.divf %31, %32 : vector<2x256xf32>
    %34 = vector.shape_cast %20 : vector<2x32xf32> to vector<2x32x1xf32>
    %35 = vector.shape_cast %33 : vector<2x256xf32> to vector<2x1x256xf32>
    %36 = vector.broadcast %34 : vector<2x32x1xf32> to vector<2x32x256xf32>
    %37 = vector.broadcast %35 : vector<2x1x256xf32> to vector<2x32x256xf32>
    %38 = arith.addf %36, %37 : vector<2x32x256xf32>
    %39 = arith.mulf %0, %38 : vector<2x32x256xf32>
    %c0_20 = arith.constant 0 : index
    %c0_21 = arith.constant 0 : index
    %c0_22 = arith.constant 0 : index
    %40 = vector.load %arg8[%c0_20, %c0_21, %c0_22] : memref<2x32x256xf32, #tpu.memory_space<vmem>>, vector<2x32x256xf32>
    tpu.vector_store %arg8[%c0_20, %c0_21, %c0_22], %39 {strides = array<i32>} : memref<2x32x256xf32, #tpu.memory_space<vmem>>, vector<2x32x256xf32>,
    return
  }
  func.func @transform_0(%arg0: i32) -> (i32, i32, i32) {
    %c0_i32 = arith.constant 0 : i32
    %c0_i32_0 = arith.constant 0 : i32
    %c0_i32_1 = arith.constant 0 : i32
    return %arg0, %c0_i32, %c0_i32_0 : i32, i32, i32
  }
  func.func @transform_1(%arg0: i32) -> (i32, i32) {
    %c0_i32 = arith.constant 0 : i32
    %c0_i32_0 = arith.constant 0 : i32
    %c0_i32_1 = arith.constant 0 : i32
    return %c0_i32, %c0_i32_0 : i32, i32
  }
  func.func @transform_2(%arg0: i32) -> (i32, i32) {
    %c0_i32 = arith.constant 0 : i32
    %c0_i32_0 = arith.constant 0 : i32
    %c0_i32_1 = arith.constant 0 : i32
    return %c0_i32, %c0_i32_0 : i32, i32
  }
  func.func @transform_3(%arg0: i32) -> (i32, i32) {
    %c0_i32 = arith.constant 0 : i32
    %c0_i32_0 = arith.constant 0 : i32
    %c0_i32_1 = arith.constant 0 : i32
    return %c0_i32, %c0_i32_0 : i32, i32
  }
  func.func @transform_4(%arg0: i32) -> (i32, i32) {
    %c0_i32 = arith.constant 0 : i32
    %c0_i32_0 = arith.constant 0 : i32
    %c0_i32_1 = arith.constant 0 : i32
    return %c0_i32, %c0_i32_0 : i32, i32
  }
  func.func @transform_5(%arg0: i32) -> (i32, i32) {
    %c0_i32 = arith.constant 0 : i32
    %c0_i32_0 = arith.constant 0 : i32
    %c0_i32_1 = arith.constant 0 : i32
    return %c0_i32, %c0_i32_0 : i32, i32
  }
  func.func @transform_6(%arg0: i32) -> i32 {
    %c0_i32 = arith.constant 0 : i32
    %c0_i32_0 = arith.constant 0 : i32
    return %c0_i32 : i32
  }
  func.func @transform_7(%arg0: i32) -> (i32, i32, i32) {
    %c0_i32 = arith.constant 0 : i32
    %c0_i32_0 = arith.constant 0 : i32
    %c0_i32_1 = arith.constant 0 : i32
    return %arg0, %c0_i32, %c0_i32_0 : i32, i32, i32
  }
}

</mosaic_0001>

<llo_original>
// kernel: tpu_custom_call.1
$region0: #{tpu_custom_call.1}
  #allocation0 [shape = 'u32[]', space=smem, size = 0x4, offset = 0x4, fixed_abs, tag = 'smem constant byte address 0x4 - core index']
  #allocation1 [shape = 'u32[72,128]{1,0:T(1,128)}', space=vmem, size = 0x9000, scoped, tag = 'internal scratch']
  #allocation2 [shape = 'f32[1]{0:T(128)S(6)}', space=smem, size = 0x200, scoped, tag = 'scoped memory for tpu_custom_call.1']
  %s0 = inlined_call_operand.hbm [shape: f32[2,32,256], index: 0, kind: input, shape index: {}]
  %s1 = inlined_call_operand.vmem [shape: f32[32,2], index: 1, kind: input, shape index: {}]
  %s2 = inlined_call_operand.vmem [shape: f32[1,2], index: 2, kind: input, shape index: {}]
  %s3 = inlined_call_operand.vmem [shape: f32[2,32], index: 3, kind: input, shape index: {}]
  %s4 = inlined_call_operand.vmem [shape: f32[1,32], index: 4, kind: input, shape index: {}]
  %s5 = inlined_call_operand.vmem [shape: f32[32,1], index: 5, kind: input, shape index: {}]
  %s6 = inlined_call_operand.<no memory space> [shape: f32[1], index: 6, kind: input, shape index: {}]
  %s7 = inlined_call_operand.hbm [shape: f32[2,32,256], index: 7, kind: output, shape index: {}]
  %s8 = sld [smem:[#allocation0]]
  $region42: #{tpu_custom_call.1} parent=0
    _
  %s10 = ssub.s32 1, %s8
  %s11 = scalar_select 0, %s10, %s8
  %12 = sst [smem:[#allocation2]] %s6
  $region1: #{tpu_custom_call.1} parent=0
    #allocation3 [shape = 'u8[65536]{0}', space=vmem, size = 0x10000, scoped, tag = 'input window, operand 0, single buffered']
    #allocation4 [shape = 's32[1]{0}', space=sflag, size = 0x4, scoped, tag = 'scoped memory for tpu_custom_call.1']
    #allocation5 [shape = 's32[1]{0}', space=sflag, size = 0x4, scoped, tag = 'scoped memory for tpu_custom_call.1']
    #allocation6 [shape = 'u8[65536]{0}', space=vmem, size = 0x10000, scoped, tag = 'output window, operand 0, single buffered']
    %13 = vsyncpa [#allocation4], 0
    %14 = vsyncpa [#allocation5], 0
    // Predicated region
    $region2: #{tpu_custom_call.1} parent=1 // pred_check
      _
    $region3: #{tpu_custom_call.1} parent=1 // pred_check_branch
      %16 = sbr.rel (0) target = $region5
    $region4: #{tpu_custom_call.1} parent=1 // pred_region
      %18 = vsyncadd [#allocation4], 0
      %s19 = sshll.u32 %s0, 4
      %s20 = int_to_ptr.hbm [resolvable:$true] %s19
      %s21 = sshll.u32 [#allocation3], 4
      %s22 = int_to_ptr.vmem [resolvable:$true] %s21
      %27 = dma.hbm_to_vmem [thread:$0]  %s20, 2048, %s22, [#allocation4], 256, 256, 16
    $region5: #{tpu_custom_call.1} parent=1 // pred_fallthru
      _
    // Predicated region
    $region6: #{tpu_custom_call.1} parent=1 // pred_check
      _
    $region7: #{tpu_custom_call.1} parent=1 // pred_check_branch
      %29 = sbr.rel (0) target = $region9
    $region8: #{tpu_custom_call.1} parent=1 // pred_region
      _
    $region9: #{tpu_custom_call.1} parent=1 // pred_fallthru
      _
    // Predicated region
    $region10: #{tpu_custom_call.1} parent=1 // pred_check
      _
    $region11: #{tpu_custom_call.1} parent=1 // pred_check_branch
      %31 = sbr.rel (0) target = $region13
    $region12: #{tpu_custom_call.1} parent=1 // pred_region
      _
    $region13: #{tpu_custom_call.1} parent=1 // pred_fallthru
      _
    // Predicated region
    $region14: #{tpu_custom_call.1} parent=1 // pred_check
      _
    $region15: #{tpu_custom_call.1} parent=1 // pred_check_branch
      %33 = sbr.rel (0) target = $region17
    $region16: #{tpu_custom_call.1} parent=1 // pred_region
      _
    $region17: #{tpu_custom_call.1} parent=1 // pred_fallthru
      _
    // Predicated region
    $region18: #{tpu_custom_call.1} parent=1 // pred_check
      _
    $region19: #{tpu_custom_call.1} parent=1 // pred_check_branch
      %35 = sbr.rel (0) target = $region21
    $region20: #{tpu_custom_call.1} parent=1 // pred_region
      _
    $region21: #{tpu_custom_call.1} parent=1 // pred_fallthru
      _
    // Predicated region
    $region22: #{tpu_custom_call.1} parent=1 // pred_check
      _
    $region23: #{tpu_custom_call.1} parent=1 // pred_check_branch
      %37 = sbr.rel (0) target = $region25
    $region24: #{tpu_custom_call.1} parent=1 // pred_region
      _
    $region25: #{tpu_custom_call.1} parent=1 // pred_fallthru
      _
    // Predicated region
    $region26: #{tpu_custom_call.1} parent=1 // pred_check
      _
    $region27: #{tpu_custom_call.1} parent=1 // pred_check_branch
      %39 = sbr.rel (0) target = $region29
    $region28: #{tpu_custom_call.1} parent=1 // pred_region
      _
    $region29: #{tpu_custom_call.1} parent=1 // pred_fallthru
      _
    // Predicated region
    $region30: #{tpu_custom_call.1} parent=1 // pred_check
      _
    $region31: #{tpu_custom_call.1} parent=1 // pred_check_branch
      %41 = sbr.rel (0) target = $region33
    $region32: #{tpu_custom_call.1} parent=1 // pred_region
      %43 = dma.done [#allocation4], 2048
    $region33: #{tpu_custom_call.1} parent=1 // pred_fallthru
      _
    %v44 = vld [vmem:[#allocation3] sm:$0xff]
    %v45 = vld [vmem:[#allocation3 + $0x8] sm:$0xff]
    %v46 = vld [vmem:[#allocation3 + $0x10] sm:$0xff]
    %v47 = vld [vmem:[#allocation3 + $0x18] sm:$0xff]
    %v48 = vld [vmem:[#allocation3 + $0x20] sm:$0xff]
    %v49 = vld [vmem:[#allocation3 + $0x28] sm:$0xff]
    %v50 = vld [vmem:[#allocation3 + $0x30] sm:$0xff]
    %v51 = vld [vmem:[#allocation3 + $0x38] sm:$0xff]
    %v52 = vld [vmem:[#allocation3 + $0x40] sm:$0xff]
    %v53 = vld [vmem:[#allocation3 + $0x48] sm:$0xff]
    %v54 = vld [vmem:[#allocation3 + $0x50] sm:$0xff]
    %v55 = vld [vmem:[#allocation3 + $0x58] sm:$0xff]
    %v56 = vld [vmem:[#allocation3 + $0x60] sm:$0xff]
    %v57 = vld [vmem:[#allocation3 + $0x68] sm:$0xff]
    %v58 = vld [vmem:[#allocation3 + $0x70] sm:$0xff]
    %v59 = vld [vmem:[#allocation3 + $0x78] sm:$0xff]
    %v60 = vadd.f32 %v44, %v45
    %61 = vadd.xlane.f32.xlu0 %v60
    %v62 = vpop.xlane.xlu0 %61
    %v63 = vadd.f32 %v46, %v47
    %64 = vadd.xlane.f32.xlu0 %v63
    %v65 = vpop.xlane.xlu0 %64
    %v66 = vadd.f32 %v48, %v49
    %67 = vadd.xlane.f32.xlu0 %v66
    %v68 = vpop.xlane.xlu0 %67
    %v69 = vadd.f32 %v50, %v51
    %70 = vadd.xlane.f32.xlu0 %v69
    %v71 = vpop.xlane.xlu0 %70
    %v72 = vadd.f32 %v52, %v53
    %73 = vadd.xlane.f32.xlu0 %v72
    %v74 = vpop.xlane.xlu0 %73
    %v75 = vadd.f32 %v54, %v55
    %76 = vadd.xlane.f32.xlu0 %v75
    %v77 = vpop.xlane.xlu0 %76
    %v78 = vadd.f32 %v56, %v57
    %79 = vadd.xlane.f32.xlu0 %v78
    %v80 = vpop.xlane.xlu0 %79
    %v81 = vadd.f32 %v58, %v59
    %82 = vadd.xlane.f32.xlu0 %v81
    %v83 = vpop.xlane.xlu0 %82
    %v84 = vmul.f32 %v62, 0.00390625
    %v85 = vmul.f32 %v65, 0.00390625
    %v86 = vmul.f32 %v68, 0.00390625
    %v87 = vmul.f32 %v71, 0.00390625
    %v88 = vmul.f32 %v74, 0.00390625
    %v89 = vmul.f32 %v77, 0.00390625
    %v90 = vmul.f32 %v80, 0.00390625
    %v91 = vmul.f32 %v83, 0.00390625
    %v92 = vld [vmem:[%s1] sm:$0xff]
    %v93 = vld [vmem:[%s1 + $0x8] sm:$0xff]
    %v94 = vld [vmem:[%s1 + $0x10] sm:$0xff]
    %v95 = vld [vmem:[%s1 + $0x18] sm:$0xff]
    %v96 = vld [vmem:[%s2] sm:$0x1]
    %v98 = vperm.slane %v96, 0
    %v108 = vlaneseq
    %v109 = vand.u32 %v108, 127
    %v110 = vperm.slane %v84, %v109
    %v111 = vadd.s32 %v109, 4294967288
    %v112 = vperm.slane %v85, %v111
    %vm113 = vcmask 130112
    %v114 = vsel %vm113, %v112, %v110
    %v115 = vadd.s32 %v109, 4294967280
    %v116 = vperm.slane %v86, %v115
    %vm117 = vcmask 195712
    %v118 = vsel %vm117, %v116, %v114
    %v119 = vadd.s32 %v109, 4294967272
    %v120 = vperm.slane %v87, %v119
    %vm121 = vcmask 261312
    %v122 = vsel %vm121, %v120, %v118
    %v123 = vperm.slane %v88, %v109
    %v124 = vperm.slane %v89, %v111
    %v125 = vsel %vm113, %v124, %v123
    %v126 = vperm.slane %v90, %v115
    %v127 = vsel %vm117, %v126, %v125
    %v128 = vperm.slane %v91, %v119
    %v129 = vsel %vm121, %v128, %v127
    %vm130 = vcmask 1041409
    %v131 = vsel %vm130, %v129, %v122
    %vm132 = vcmask 261120
    %v133 = vsel %vm132, %v131, 0
    %135 = vmatpush.msra.mxu0 0.0
    %136 = vmatpush.msra.mxu0 0.0
    %137 = vmatpush.msra.mxu0 0.0
    %138 = vmatpush.msra.mxu0 0.0
    %139 = vmatpush.msra.mxu0 0.0
    %140 = vmatpush.msra.mxu0 0.0
    %141 = vmatpush.msra.mxu0 0.0
    %142 = vmatpush.msra.mxu0 0.0
    %143 = vmatpush.msra.mxu0 0.0
    %144 = vmatpush.msra.mxu0 0.0
    %145 = vmatpush.msra.mxu0 0.0
    %146 = vmatpush.msra.mxu0 0.0
    %147 = vmatpush.msra.mxu0 %v95
    %148 = vmatpush.msra.mxu0 %v94
    %149 = vmatpush.msra.mxu0 %v93
    %150 = vmatpush.msra.mxu0 %v92
    %151 = vmatmul.f32.gmra.mxu0 %v133
    %v152 = vpop.f32.mrf.mxu0
    %v153 = vadd.f32 %v98, %v152
    %154 = vdwg.mxu0
    %v155 = vmax.f32 %v153, 0.0
    %v156 = vld [vmem:[%s3] sm:$0x3]
    %v157 = vld [vmem:[%s4] sm:$0x1]
    %v159 = vperm.slane %v157, 0
    %vm161 = vcmask 15360
    %v163 = vsel %vm161, %v155, 0
    %vm165 = vcmask 1041408
    %v167 = vsel %vm165, %v156, 0
    %169 = vmatpush.msra.mxu0 0.0
    %170 = vmatpush.msra.mxu0 0.0
    %171 = vmatpush.msra.mxu0 0.0
    %172 = vmatpush.msra.mxu0 0.0
    %173 = vmatpush.msra.mxu0 0.0
    %174 = vmatpush.msra.mxu0 0.0
    %175 = vmatpush.msra.mxu0 0.0
    %176 = vmatpush.msra.mxu0 0.0
    %177 = vmatpush.msra.mxu0 0.0
    %178 = vmatpush.msra.mxu0 0.0
    %179 = vmatpush.msra.mxu0 0.0
    %180 = vmatpush.msra.mxu0 0.0
    %181 = vmatpush.msra.mxu0 0.0
    %182 = vmatpush.msra.mxu0 0.0
    %183 = vmatpush.msra.mxu0 0.0
    %184 = vmatpush.msra.mxu0 %v167
    %185 = vmatmul.f32.gmra.mxu0 %v163
    %v186 = vpop.f32.mrf.mxu0
    %v187 = vadd.f32 %v159, %v186
    %188 = vdwg.mxu0
    %v189 = vxor.u32 %v187, 2147483648
    %v190 = vmul.f32 %v189, 1.442695
    %v191 = vpow.pop %v190
    %v192 = vadd.f32 %v191, 1.0
    %v193 = vrcp.pop %v192
    %v194 = vmul.f32 %v192, %v193
    %v195 = vsub.f32 1.0, %v194
    %v196 = vmul.f32 %v193, %v195
    %v197 = vadd.f32 %v193, %v196
    %vm198 = vweird.f32 %v192
    %vm199 = vweird.f32 %v193
    %vm200 = vmor %vm198, %vm199
    %v201 = vsel %vm200, %v193, %v197
    %v202 = vand.u32 2147483647, %v192
    %vm203 = vcmp.eq.f32.partialorder %v202, 8.507059e+37
    %v204 = vand.u32 %v192, 2147483648
    %v205 = vor.u32 1.1754944e-38, %v204
    %v206 = vsel %vm203, %v205, %v201
    %v207 = vmul.f32 1.0, %v206
    %v208 = vld [vmem:[%s5] sm:$0xff]
    %v209 = vld [vmem:[%s5 + $0x8] sm:$0xff]
    %v210 = vld [vmem:[%s5 + $0x10] sm:$0xff]
    %v211 = vld [vmem:[%s5 + $0x18] sm:$0xff]
    %213 = vset.pattern.permute.xlu0 0
    %214 = vperm.xlu0 %213, %v208
    %v215 = vpop.permute.xlu0 %214
    %218 = vset.pattern.permute.xlu0 0
    %219 = vperm.xlu0 %218, %v209
    %v220 = vpop.permute.xlu0 %219
    %223 = vset.pattern.permute.xlu0 0
    %224 = vperm.xlu0 %223, %v210
    %v225 = vpop.permute.xlu0 %224
    %228 = vset.pattern.permute.xlu0 0
    %229 = vperm.xlu0 %228, %v211
    %v230 = vpop.permute.xlu0 %229
    %v232 = vmul.f32 %v44, %v215
    %v233 = vmul.f32 %v45, %v215
    %v234 = vmul.f32 %v46, %v220
    %v235 = vmul.f32 %v47, %v220
    %v236 = vmul.f32 %v48, %v225
    %v237 = vmul.f32 %v49, %v225
    %v238 = vmul.f32 %v50, %v230
    %v239 = vmul.f32 %v51, %v230
    %v240 = vmul.f32 %v52, %v215
    %v241 = vmul.f32 %v53, %v215
    %v242 = vmul.f32 %v54, %v220
    %v243 = vmul.f32 %v55, %v220
    %v244 = vmul.f32 %v56, %v225
    %v245 = vmul.f32 %v57, %v225
    %v246 = vmul.f32 %v58, %v230
    %v247 = vmul.f32 %v59, %v230
    %v248 = vadd.f32 %v232, %v234
    %v249 = vadd.f32 %v248, %v236
    %v250 = vadd.f32 %v249, %v238
    %v251 = vrot.slane %v250, 4
    %v252 = vadd.f32 %v250, %v251
    %v253 = vrot.slane %v252, 2
    %v254 = vadd.f32 %v252, %v253
    %v255 = vrot.slane %v254, 1
    %v256 = vadd.f32 %v254, %v255
    %v257 = vadd.f32 %v233, %v235
    %v258 = vadd.f32 %v257, %v237
    %v259 = vadd.f32 %v258, %v239
    %v260 = vrot.slane %v259, 4
    %v261 = vadd.f32 %v259, %v260
    %v262 = vrot.slane %v261, 2
    %v263 = vadd.f32 %v261, %v262
    %v264 = vrot.slane %v263, 1
    %v265 = vadd.f32 %v263, %v264
    %v266 = vadd.f32 %v240, %v242
    %v267 = vadd.f32 %v266, %v244
    %v268 = vadd.f32 %v267, %v246
    %v269 = vrot.slane %v268, 4
    %v270 = vadd.f32 %v268, %v269
    %v271 = vrot.slane %v270, 2
    %v272 = vadd.f32 %v270, %v271
    %v273 = vrot.slane %v272, 1
    %v274 = vadd.f32 %v272, %v273
    %v275 = vadd.f32 %v241, %v243
    %v276 = vadd.f32 %v275, %v245
    %v277 = vadd.f32 %v276, %v247
    %v278 = vrot.slane %v277, 4
    %v279 = vadd.f32 %v277, %v278
    %v280 = vrot.slane %v279, 2
    %v281 = vadd.f32 %v279, %v280
    %v282 = vrot.slane %v281, 1
    %v283 = vadd.f32 %v281, %v282
    %s284 = sld [smem:[#allocation2]]
    %v285 = vstv %s284
    %v286 = vadd.f32 %v256, %v285
    %v287 = vadd.f32 %v265, %v285
    %v288 = vadd.f32 %v274, %v285
    %v289 = vadd.f32 %v283, %v285
    %v290 = vxor.u32 %v286, 2147483648
    %v291 = vxor.u32 %v287, 2147483648
    %v292 = vxor.u32 %v288, 2147483648
    %v293 = vxor.u32 %v289, 2147483648
    %v294 = vmul.f32 %v290, 1.442695
    %v295 = vpow.pop %v294
    %v296 = vmul.f32 %v291, 1.442695
    %v297 = vpow.pop %v296
    %v298 = vmul.f32 %v292, 1.442695
    %v299 = vpow.pop %v298
    %v300 = vmul.f32 %v293, 1.442695
    %v301 = vpow.pop %v300
    %v302 = vadd.f32 %v295, 1.0
    %v303 = vadd.f32 %v297, 1.0
    %v304 = vadd.f32 %v299, 1.0
    %v305 = vadd.f32 %v301, 1.0
    %v306 = vrcp.pop %v302
    %v307 = vmul.f32 %v302, %v306
    %v308 = vsub.f32 1.0, %v307
    %v309 = vmul.f32 %v306, %v308
    %v310 = vadd.f32 %v306, %v309
    %vm311 = vweird.f32 %v302
    %vm312 = vweird.f32 %v306
    %vm313 = vmor %vm311, %vm312
    %v314 = vsel %vm313, %v306, %v310
    %v315 = vand.u32 2147483647, %v302
    %vm316 = vcmp.eq.f32.partialorder %v315, 8.507059e+37
    %v317 = vand.u32 %v302, 2147483648
    %v318 = vor.u32 1.1754944e-38, %v317
    %v319 = vsel %vm316, %v318, %v314
    %v320 = vmul.f32 1.0, %v319
    %v321 = vrcp.pop %v303
    %v322 = vmul.f32 %v303, %v321
    %v323 = vsub.f32 1.0, %v322
    %v324 = vmul.f32 %v321, %v323
    %v325 = vadd.f32 %v321, %v324
    %vm326 = vweird.f32 %v303
    %vm327 = vweird.f32 %v321
    %vm328 = vmor %vm326, %vm327
    %v329 = vsel %vm328, %v321, %v325
    %v330 = vand.u32 2147483647, %v303
    %vm331 = vcmp.eq.f32.partialorder %v330, 8.507059e+37
    %v332 = vand.u32 %v303, 2147483648
    %v333 = vor.u32 1.1754944e-38, %v332
    %v334 = vsel %vm331, %v333, %v329
    %v335 = vmul.f32 1.0, %v334
    %v336 = vrcp.pop %v304
    %v337 = vmul.f32 %v304, %v336
    %v338 = vsub.f32 1.0, %v337
    %v339 = vmul.f32 %v336, %v338
    %v340 = vadd.f32 %v336, %v339
    %vm341 = vweird.f32 %v304
    %vm342 = vweird.f32 %v336
    %vm343 = vmor %vm341, %vm342
    %v344 = vsel %vm343, %v336, %v340
    %v345 = vand.u32 2147483647, %v304
    %vm346 = vcmp.eq.f32.partialorder %v345, 8.507059e+37
    %v347 = vand.u32 %v304, 2147483648
    %v348 = vor.u32 1.1754944e-38, %v347
    %v349 = vsel %vm346, %v348, %v344
    %v350 = vmul.f32 1.0, %v349
    %v351 = vrcp.pop %v305
    %v352 = vmul.f32 %v305, %v351
    %v353 = vsub.f32 1.0, %v352
    %v354 = vmul.f32 %v351, %v353
    %v355 = vadd.f32 %v351, %v354
    %vm356 = vweird.f32 %v305
    %vm357 = vweird.f32 %v351
    %vm358 = vmor %vm356, %vm357
    %v359 = vsel %vm358, %v351, %v355
    %v360 = vand.u32 2147483647, %v305
    %vm361 = vcmp.eq.f32.partialorder %v360, 8.507059e+37
    %v362 = vand.u32 %v305, 2147483648
    %v363 = vor.u32 1.1754944e-38, %v362
    %v364 = vsel %vm361, %v363, %v359
    %v365 = vmul.f32 1.0, %v364
    %v366 = vperm.slane %v207, 0
    %v367 = vlaneseq
    %v368 = vshrl.u32 %v367, 7
    %370 = vset.pattern.permute.xlu0 %v368
    %371 = vperm.xlu0 %370, %v366
    %v372 = vpop.permute.xlu0 %371
    %v373 = vlaneseq
    %v374 = vshrl.u32 %v373, 7
    %v375 = vadd.s32 %v374, 8
    %376 = vset.pattern.permute.xlu0 %v375
    %377 = vperm.xlu0 %376, %v366
    %v378 = vpop.permute.xlu0 %377
    %v379 = vlaneseq
    %v380 = vshrl.u32 %v379, 7
    %v381 = vadd.s32 %v380, 16
    %382 = vset.pattern.permute.xlu0 %v381
    %383 = vperm.xlu0 %382, %v366
    %v384 = vpop.permute.xlu0 %383
    %v385 = vlaneseq
    %v386 = vshrl.u32 %v385, 7
    %v387 = vadd.s32 %v386, 24
    %388 = vset.pattern.permute.xlu0 %v387
    %389 = vperm.xlu0 %388, %v366
    %v390 = vpop.permute.xlu0 %389
    %v391 = vperm.slane %v207, 1
    %v392 = vlaneseq
    %v393 = vshrl.u32 %v392, 7
    %395 = vset.pattern.permute.xlu0 %v393
    %396 = vperm.xlu0 %395, %v391
    %v397 = vpop.permute.xlu0 %396
    %v398 = vlaneseq
    %v399 = vshrl.u32 %v398, 7
    %v400 = vadd.s32 %v399, 8
    %401 = vset.pattern.permute.xlu0 %v400
    %402 = vperm.xlu0 %401, %v391
    %v403 = vpop.permute.xlu0 %402
    %v404 = vlaneseq
    %v405 = vshrl.u32 %v404, 7
    %v406 = vadd.s32 %v405, 16
    %407 = vset.pattern.permute.xlu0 %v406
    %408 = vperm.xlu0 %407, %v391
    %v409 = vpop.permute.xlu0 %408
    %v410 = vlaneseq
    %v411 = vshrl.u32 %v410, 7
    %v412 = vadd.s32 %v411, 24
    %413 = vset.pattern.permute.xlu0 %v412
    %414 = vperm.xlu0 %413, %v391
    %v415 = vpop.permute.xlu0 %414
    %v416 = vadd.f32 %v372, %v320
    %v417 = vadd.f32 %v372, %v335
    %v418 = vadd.f32 %v378, %v320
    %v419 = vadd.f32 %v378, %v335
    %v420 = vadd.f32 %v384, %v320
    %v421 = vadd.f32 %v384, %v335
    %v422 = vadd.f32 %v390, %v320
    %v423 = vadd.f32 %v390, %v335
    %v424 = vadd.f32 %v397, %v350
    %v425 = vadd.f32 %v397, %v365
    %v426 = vadd.f32 %v403, %v350
    %v427 = vadd.f32 %v403, %v365
    %v428 = vadd.f32 %v409, %v350
    %v429 = vadd.f32 %v409, %v365
    %v430 = vadd.f32 %v415, %v350
    %v431 = vadd.f32 %v415, %v365
    %v432 = vmul.f32 %v44, %v416
    %v433 = vmul.f32 %v45, %v417
    %v434 = vmul.f32 %v46, %v418
    %v435 = vmul.f32 %v47, %v419
    %v436 = vmul.f32 %v48, %v420
    %v437 = vmul.f32 %v49, %v421
    %v438 = vmul.f32 %v50, %v422
    %v439 = vmul.f32 %v51, %v423
    %v440 = vmul.f32 %v52, %v424
    %v441 = vmul.f32 %v53, %v425
    %v442 = vmul.f32 %v54, %v426
    %v443 = vmul.f32 %v55, %v427
    %v444 = vmul.f32 %v56, %v428
    %v445 = vmul.f32 %v57, %v429
    %v446 = vmul.f32 %v58, %v430
    %v447 = vmul.f32 %v59, %v431
    %448 = vst [vmem:[#allocation6] sm:$0xff] %v432
    %449 = vst [vmem:[#allocation6 + $0x8] sm:$0xff] %v433
    %450 = vst [vmem:[#allocation6 + $0x10] sm:$0xff] %v434
    %451 = vst [vmem:[#allocation6 + $0x18] sm:$0xff] %v435
    %452 = vst [vmem:[#allocation6 + $0x20] sm:$0xff] %v436
    %453 = vst [vmem:[#allocation6 + $0x28] sm:$0xff] %v437
    %454 = vst [vmem:[#allocation6 + $0x30] sm:$0xff] %v438
    %455 = vst [vmem:[#allocation6 + $0x38] sm:$0xff] %v439
    %456 = vst [vmem:[#allocation6 + $0x40] sm:$0xff] %v440
    %457 = vst [vmem:[#allocation6 + $0x48] sm:$0xff] %v441
    %458 = vst [vmem:[#allocation6 + $0x50] sm:$0xff] %v442
    %459 = vst [vmem:[#allocation6 + $0x58] sm:$0xff] %v443
    %460 = vst [vmem:[#allocation6 + $0x60] sm:$0xff] %v444
    %461 = vst [vmem:[#allocation6 + $0x68] sm:$0xff] %v445
    %462 = vst [vmem:[#allocation6 + $0x70] sm:$0xff] %v446
    %463 = vst [vmem:[#allocation6 + $0x78] sm:$0xff] %v447
    // Predicated region
    $region34: #{tpu_custom_call.1} parent=1 // pred_check
      _
    $region35: #{tpu_custom_call.1} parent=1 // pred_check_branch
      %465 = sbr.rel (0) target = $region37
    $region36: #{tpu_custom_call.1} parent=1 // pred_region
      %467 = vsyncadd [#allocation5], 0
      %s468 = sshll.u32 [#allocation6], 4
      %s469 = int_to_ptr.vmem [resolvable:$true] %s468
      %s470 = sshll.u32 %s7, 4
      %s471 = int_to_ptr.hbm [resolvable:$true] %s470
      %476 = dma.vmem_to_hbm [thread:$0]  %s469, 2048, %s471, [#allocation5], 256, 256, 16
    $region37: #{tpu_custom_call.1} parent=1 // pred_fallthru
      _
    // Predicated region
    $region38: #{tpu_custom_call.1} parent=1 // pred_check
      _
    $region39: #{tpu_custom_call.1} parent=1 // pred_check_branch
      %478 = sbr.rel (0) target = $region41
    $region40: #{tpu_custom_call.1} parent=1 // pred_region
      %480 = dma.done [#allocation5], 2048
    $region41: #{tpu_custom_call.1} parent=1 // pred_fallthru
      _
    %481 = vsyncpa [#allocation4], 1
    %482 = vsyncpa [#allocation5], 1

</llo_original>
